<compile_context>
chip_gen: v7x
topology: tpu7x:2x2x1
jax: 0.10.0
libtpu: 0.0.40
codegen_flags: <defaults>
</compile_context>

<pallas_src>
import numpy as np
import jax
import jax.numpy as jnp
from jax.experimental import pallas as pl
from jax.experimental.pallas import tpu as pltpu

C_IN = 36          # input_size  (conv in-channels)
C_MID = 15         # fully_connected_layer (conv out-channels == fc in-features)
NUM_CLASSES = 2
SEQ = 2            # nx; must satisfy (nx + 1) // 2 == 1 for fc1 to match (nx in {1, 2})
MAX_TILE_B = 2048  # cap: ~0.6 MiB of useful payload per x tile, ~4 MiB total VMEM


def net_kernel(x_ref, w_ref, b_ref, fc_ref, o_ref):
    """Fused conv1d(k=2,pad=1) + ReLU + MaxPool(2,2) + Linear + ReLU + sigmoid.

    x_ref  : (tb, nx*36)  f32   raw flat activations (batch tile)
    w_ref  : (nx*36, 32)  bf16  interleaved conv weights (cols 15/31 zero)
    b_ref  : (1, 32)      f32   [conv_b, 1.0, conv_b, 1.0]  (1.0 sentinels fold fc bias)
    fc_ref : (16, 2)      bf16  rows 0:15 = fc_w.T, row 15 = fc_b
    o_ref  : (tb, 2)      f32
    """
    x = x_ref[...].astype(jnp.bfloat16)                    # in-kernel cast (review #1)
    # Fused conv (both taps + implicit zero pad) as one bf16 MXU matmul, f32 acc.
    y = jnp.dot(x, w_ref[...], preferred_element_type=jnp.float32)      # (tb, 32)
    y = y + b_ref[...]                                     # conv bias (+ 1.0 sentinels)
    # ReLU + MaxPool1d(2,2) over the two kept conv positions (max/relu commute).
    p = jnp.maximum(jnp.maximum(y[:, 0:16], y[:, 16:32]), 0.0)          # (tb,16); p[:,15]==1
    # fc1 as a single-pass bf16 MXU dot (fc bias folded via the sentinel column).
    z = jnp.dot(p.astype(jnp.bfloat16), fc_ref[...],
                preferred_element_type=jnp.float32)                     # (tb, 2)
    z = jnp.maximum(z, 0.0)
    o_ref[...] = pl.reciprocal(1.0 + jnp.exp(-z), approx=True)          # sigmoid on the EUP


def _round_up(n, m):
    return -(-n // m) * m


def _choose_tile_b(B, max_tile=MAX_TILE_B):
    """Batch-tile size (review #2/#3).

    - B < 256: one block equal to the full batch (block dim == array dim, so
      no 8-row granule requirement; latency-bound anyway).
    - else: ~B/2 rounded up to 8, capped at max_tile -> always >= 2 grid steps
      (keeps both v7x TensorCores busy) while each DMA stays large enough for
      the v5e/v6e HBM-roofline regime.
    """
    if B < 256:
        return B
    b_padded = _round_up(B, 8)
    tb = _round_up(-(-b_padded // 2), 8)
    return min(max_tile, tb)


def pack_params(conv_w, conv_b, fc_w, fc_b, nx):
    """Host-side, once. conv_w:(15,36,2) conv_b:(15,) fc_w:(2,15) fc_b:(2,)."""
    assert nx in (1, 2)
    conv_w = np.asarray(conv_w, np.float32)
    conv_b = np.asarray(conv_b, np.float32)
    fc_w = np.asarray(fc_w, np.float32)
    fc_b = np.asarray(fc_b, np.float32)
    K = nx * C_IN
    wcat = np.zeros((K, 32), np.float32)
    for c in range(C_IN):
        if nx == 2:
            # PyTorch reshape (B,nx,36)->(B,36,nx): x_r[:,c,0]=x_flat[:,2c], x_r[:,c,1]=x_flat[:,2c+1]
            wcat[2 * c,     0:15]  = conv_w[:, c, 1]   # pos 0: left tap hits the zero pad
            wcat[2 * c,     16:31] = conv_w[:, c, 0]   # pos 1, tap 0
            wcat[2 * c + 1, 16:31] = conv_w[:, c, 1]   # pos 1, tap 1
        else:  # nx == 1: x_flat[:, c] = x_r[:, c, 0]
            wcat[c, 0:15]  = conv_w[:, c, 1]
            wcat[c, 16:31] = conv_w[:, c, 0]
    bias = np.zeros((1, 32), np.float32)
    bias[0, 0:15] = conv_b
    bias[0, 15] = 1.0                   # sentinel -> p[:, 15] == 1 (folds fc bias)
    bias[0, 16:31] = conv_b
    bias[0, 31] = 1.0
    fc = np.zeros((16, 2), np.float32)
    fc[0:15, :] = fc_w.T                # (15, 2)
    fc[15, :] = fc_b
    return (jnp.asarray(wcat, jnp.bfloat16),
            jnp.asarray(bias, jnp.float32),
            jnp.asarray(fc, jnp.bfloat16))


def net_forward(x, packed, *, max_tile_b=MAX_TILE_B):
    """x:(B, nx, 36) float32; packed = pack_params(...). Returns (B, 2) f32."""
    wcat, bias, fc = packed
    B, nx, ny = x.shape
    assert ny == C_IN, "last input dim must equal conv in-channels (36)"
    assert (nx + 1) // 2 == 1, "fc1(15,2) requires pooled length 1 (nx in {1,2})"
    K = nx * ny
    assert wcat.shape[0] == K

    # Raw flat f32 input straight into the kernel: no pad pass, no cast pass,
    # no conv-pad / transpose glue (reshape is a free view).
    x_flat = x.reshape(B, K)
    tb = _choose_tile_b(B, max_tile_b)
    grid_steps = pl.cdiv(B, tb)

    return pl.pallas_call(
        net_kernel,
        out_shape=jax.ShapeDtypeStruct((B, NUM_CLASSES), jnp.float32),
        grid=(grid_steps,),
        in_specs=[
            pl.BlockSpec((tb, K), lambda i: (i, 0)),     # f32 activations, batch-tiled
            pl.BlockSpec((K, 32), lambda i: (0, 0)),     # conv weights, resident in VMEM
            pl.BlockSpec((1, 32), lambda i: (0, 0)),     # conv bias + sentinels, resident
            pl.BlockSpec((16, 2), lambda i: (0, 0)),     # fc weights+bias, resident
        ],
        out_specs=pl.BlockSpec((tb, NUM_CLASSES), lambda i: (i, 0)),
        compiler_params=pltpu.CompilerParams(
            dimension_semantics=("parallel",)),           # v7x: shard batch over 2 TCs
    )(x_flat, wcat, bias, fc)


def ref_forward(x, params):
    """Pure-JAX f32 reference mirroring the PyTorch forward exactly."""
    conv_w, conv_b, fc_w, fc_b = params
    B, nx, ny = x.shape
    xr = x.reshape(B, ny, nx)
    xp = jnp.pad(xr, ((0, 0), (0, 0), (1, 1)))
    Lc = nx + 1
    taps = []
    for t in range(Lc):
        y = (jnp.einsum('bc,oc->bo', xp[:, :, t], conv_w[:, :, 0])
             + jnp.einsum('bc,oc->bo', xp[:, :, t + 1], conv_w[:, :, 1])
             + conv_b)
        taps.append(y)
    y = jnp.stack(taps, axis=-1)                    # (B, 15, Lc)
    y = jnp.maximum(y, 0.0)
    Lp = Lc // 2
    y = y[:, :, :Lp * 2].reshape(B, C_MID, Lp, 2).max(-1)
    y = y.reshape(B, -1)
    z = jnp.maximum(y @ fc_w.T + fc_b, 0.0)
    return jax.nn.sigmoid(z)


if __name__ == "__main__":
    key = jax.random.PRNGKey(0)
    kx, k1, k2, k3, k4 = jax.random.split(key, 5)
    B = 500                                         # non-multiple of the tile: exercises the
                                                    # ragged tail (grid = 2 tiles of 256)
    x = jax.random.normal(kx, (B, SEQ, C_IN), jnp.float32)
    conv_w = 0.1 * jax.random.normal(k1, (C_MID, C_IN, 2), jnp.float32)   # (out, in, k)
    conv_b = 0.1 * jax.random.normal(k2, (C_MID,), jnp.float32)
    fc_w = 0.1 * jax.random.normal(k3, (NUM_CLASSES, C_MID), jnp.float32)  # (out, in)
    fc_b = 0.1 * jax.random.normal(k4, (NUM_CLASSES,), jnp.float32)
    params = (conv_w, conv_b, fc_w, fc_b)

    packed = pack_params(conv_w, conv_b, fc_w, fc_b, SEQ)
    out = jax.block_until_ready(net_forward(x, packed))

    ref = jax.block_until_ready(ref_forward(x, params))
    assert out.shape == (B, NUM_CLASSES)
    # bf16 activations/weights + approx-EUP reciprocal sigmoid vs exact-f32 reference.
    max_err = float(jnp.max(jnp.abs(out - ref)))
    assert max_err < 2e-2, max_err

    print("KERNEL_OK")
</pallas_src>

<mosaic_0001>
module attributes {stable_mosaic.version = 11 : i64} {
  func.func @net_kernel(%arg0: i32, %arg1: memref<256x72xf32, #tpu.memory_space<vmem>>, %arg2: memref<72x32xbf16, #tpu.memory_space<vmem>>, %arg3: memref<1x32xf32, #tpu.memory_space<vmem>>, %arg4: memref<16x2xbf16, #tpu.memory_space<vmem>>, %arg5: memref<256x2xf32, #tpu.memory_space<vmem>>) attributes {dimension_semantics = [#tpu.dimension_semantics<parallel>], iteration_bounds = array<i64: 2>, scalar_prefetch = 0 : i64, scratch_operands = 0 : i64, tpu.core_type = #tpu.core_type<tc>, window_params = [{transform_indices = @transform_0, window_bounds = array<i64: 256, 72>}, {pipeline_mode = #tpu.pipeline_mode<synchronous>, transform_indices = @transform_1, window_bounds = array<i64: 72, 32>}, {pipeline_mode = #tpu.pipeline_mode<synchronous>, transform_indices = @transform_2, window_bounds = array<i64: 1, 32>}, {pipeline_mode = #tpu.pipeline_mode<synchronous>, transform_indices = @transform_3, window_bounds = array<i64: 16, 2>}, {transform_indices = @transform_4, window_bounds = array<i64: 256, 2>}]} {
    %c0 = arith.constant 0 : index
    %c0_0 = arith.constant 0 : index
    %0 = vector.load %arg1[%c0, %c0_0] : memref<256x72xf32, #tpu.memory_space<vmem>>, vector<256x72xf32>
    %1 = arith.truncf %0 : vector<256x72xf32> to vector<256x72xbf16>
    %c0_1 = arith.constant 0 : index
    %c0_2 = arith.constant 0 : index
    %2 = vector.load %arg2[%c0_1, %c0_2] : memref<72x32xbf16, #tpu.memory_space<vmem>>, vector<72x32xbf16>
    %cst = arith.constant dense<0.000000e+00> : vector<256x32xf32>
    %3 = tpu.matmul %1, %2, %cst {dimension_numbers = #tpu.dot_dimension_numbers<[1], [0], [0], [1], [0, 0, 1, 1], [], []>} : vector<256x72xbf16>, vector<72x32xbf16>, vector<256x32xf32> -> vector<256x32xf32>
    %c0_3 = arith.constant 0 : index
    %c0_4 = arith.constant 0 : index
    %4 = vector.load %arg3[%c0_3, %c0_4] : memref<1x32xf32, #tpu.memory_space<vmem>>, vector<1x32xf32>
    %5 = vector.broadcast %4 : vector<1x32xf32> to vector<256x32xf32>
    %6 = arith.addf %3, %5 : vector<256x32xf32>
    %7 = vector.extract_strided_slice %6 {offsets = [0, 0], sizes = [256, 16], strides = [1, 1]} : vector<256x32xf32> to vector<256x16xf32>
    %8 = vector.extract_strided_slice %6 {offsets = [0, 16], sizes = [256, 16], strides = [1, 1]} : vector<256x32xf32> to vector<256x16xf32>
    %9 = arith.maximumf %7, %8 : vector<256x16xf32>
    %cst_5 = arith.constant 0.000000e+00 : f32
    %10 = vector.broadcast %cst_5 : f32 to vector<256x16xf32>
    %11 = arith.maximumf %9, %10 : vector<256x16xf32>
    %12 = arith.truncf %11 : vector<256x16xf32> to vector<256x16xbf16>
    %c0_6 = arith.constant 0 : index
    %c0_7 = arith.constant 0 : index
    %13 = vector.load %arg4[%c0_6, %c0_7] : memref<16x2xbf16, #tpu.memory_space<vmem>>, vector<16x2xbf16>
    %cst_8 = arith.constant dense<0.000000e+00> : vector<256x2xf32>
    %14 = tpu.matmul %12, %13, %cst_8 {dimension_numbers = #tpu.dot_dimension_numbers<[1], [0], [0], [1], [0, 0, 1, 1], [], []>} : vector<256x16xbf16>, vector<16x2xbf16>, vector<256x2xf32> -> vector<256x2xf32>
    %cst_9 = arith.constant 0.000000e+00 : f32
    %15 = vector.broadcast %cst_9 : f32 to vector<256x2xf32>
    %16 = arith.maximumf %14, %15 : vector<256x2xf32>
    %cst_10 = arith.constant 0.000000e+00 : f32
    %17 = vector.broadcast %cst_10 : f32 to vector<256x2xf32>
    %18 = arith.subf %17, %16 : vector<256x2xf32>
    %19 = math.exp %18 : vector<256x2xf32>
    %cst_11 = arith.constant 1.000000e+00 : f32
    %20 = vector.broadcast %cst_11 : f32 to vector<256x2xf32>
    %21 = arith.addf %20, %19 : vector<256x2xf32>
    %22 = tpu.reciprocal %21 {approx = true} : vector<256x2xf32> -> vector<256x2xf32>
    %c0_12 = arith.constant 0 : index
    %c0_13 = arith.constant 0 : index
    %23 = vector.load %arg5[%c0_12, %c0_13] : memref<256x2xf32, #tpu.memory_space<vmem>>, vector<256x2xf32>
    tpu.vector_store %arg5[%c0_12, %c0_13], %22 {strides = array<i32>} : memref<256x2xf32, #tpu.memory_space<vmem>>, vector<256x2xf32>,
    return
  }
  func.func @transform_0(%arg0: i32) -> (i32, i32) {
    %c0_i32 = arith.constant 0 : i32
    %c0_i32_0 = arith.constant 0 : i32
    return %arg0, %c0_i32 : i32, i32
  }
  func.func @transform_1(%arg0: i32) -> (i32, i32) {
    %c0_i32 = arith.constant 0 : i32
    %c0_i32_0 = arith.constant 0 : i32
    %c0_i32_1 = arith.constant 0 : i32
    return %c0_i32, %c0_i32_0 : i32, i32
  }
  func.func @transform_2(%arg0: i32) -> (i32, i32) {
    %c0_i32 = arith.constant 0 : i32
    %c0_i32_0 = arith.constant 0 : i32
    %c0_i32_1 = arith.constant 0 : i32
    return %c0_i32, %c0_i32_0 : i32, i32
  }
  func.func @transform_3(%arg0: i32) -> (i32, i32) {
    %c0_i32 = arith.constant 0 : i32
    %c0_i32_0 = arith.constant 0 : i32
    %c0_i32_1 = arith.constant 0 : i32
    return %c0_i32, %c0_i32_0 : i32, i32
  }
  func.func @transform_4(%arg0: i32) -> (i32, i32) {
    %c0_i32 = arith.constant 0 : i32
    %c0_i32_0 = arith.constant 0 : i32
    return %arg0, %c0_i32 : i32, i32
  }
}

</mosaic_0001>

<llo_original>
// kernel: tpu_custom_call.1
$region0: #{tpu_custom_call.1}
  #allocation0 [shape = 'u32[]', space=smem, size = 0x4, offset = 0x4, fixed_abs, tag = 'smem constant byte address 0x4 - core index']
  #allocation1 [shape = 'u32[144,128]{1,0:T(1,128)}', space=vmem, size = 0x12000, scoped, tag = 'internal scratch']
  %s0 = inlined_call_operand.vmem [shape: f32[500,72], index: 0, kind: input, shape index: {}]
  %s1 = inlined_call_operand.vmem [shape: bf16[72,32], index: 1, kind: input, shape index: {}]
  %s2 = inlined_call_operand.vmem [shape: f32[1,32], index: 2, kind: input, shape index: {}]
  %s3 = inlined_call_operand.vmem [shape: bf16[16,2], index: 3, kind: input, shape index: {}]
  %s4 = inlined_call_operand.vmem [shape: f32[500,2], index: 4, kind: output, shape index: {}]
  %s5 = sld [smem:[#allocation0]]
  $region97: #{tpu_custom_call.1} parent=0
    _
  %s7 = ssub.s32 1, %s5
  %s8 = scalar_select 0, %s7, %s5
  $region1: #{tpu_custom_call.1} parent=0
    #allocation2 [shape = 'u8[262144]{0}', space=vmem, size = 0x40000, scoped, tag = 'output window, operand 0']
    loop: start=0, step=1, limit=4
    $region2: #{tpu_custom_call.1} parent=1 // loop_pre_header
      _
    $region3: #{tpu_custom_call.1} parent=1 // loop_header
      %s10 = sphi 0, %s14
      %p11 = scmp.ge.s32.totalorder %s10, 4
      %s20 = sphi 0, %s22
      %s23 = sphi 0, %s20
      %s24 = sphi 0, %s23
      %s40 = sphi 0, %s24
      %s44 = sphi 0, %s44
      %s46 = sphi 0, %s44
      %s47 = sphi 0, %s46
      %s61 = sphi 0, %s47
      %s65 = sphi 0, %s65
      %s67 = sphi 0, %s65
      %s68 = sphi 0, %s67
      %s82 = sphi 0, %s68
      %s86 = sphi 0, %s86
      %s88 = sphi 0, %s86
      %s89 = sphi 0, %s88
      %s103 = sphi 0, %s89
      %s109 = sphi 0, %s111
      %s112 = sphi 0, %s109
      %s113 = sphi 0, %s112
      %s129 = sphi 0, %s113
    $region4: #{tpu_custom_call.1} parent=1 // loop_header_branch
      %13 = sbr.rel (%p11) target = $region8
    $region5: #{tpu_custom_call.1} parent=1 // loop_body
      %s15 = ssub.s32 %s10, 1
      %s16 = ssub.s32 %s10, 2
      %s17 = sadd.s32 %s10, 1
      %s18 = ssub.s32 %s10, %s17
      %p19 = scmp.eq.s32.totalorder %s18, 0
      %s21 = sadd.s32 %s20, 1
      %s22 = scalar_select %p19, %s20, %s21
      %p25 = pneg %p19
      %p26 = scmp.eq.s32.totalorder %s10, 1
      %p27 = por %p25, %p26
      %p28 = scmp.ne.s32.totalorder %s20, %s23
      %p29 = scmp.eq.s32.totalorder %s10, 0
      %p30 = por %p28, %p29
      %p31 = scmp.ne.s32.totalorder %s20, %s23
      %p32 = scmp.eq.s32.totalorder %s15, 1
      %p33 = por %p31, %p32
      %p34 = scmp.ne.s32.totalorder %s23, %s24
      %p35 = scmp.eq.s32.totalorder %s15, 0
      %p36 = por %p34, %p35
      %p37 = scmp.ne.s32.totalorder %s23, %s24
      %p38 = scmp.eq.s32.totalorder %s16, 1
      %p39 = por %p37, %p38
      %p41 = scmp.ne.s32.totalorder %s24, %s40
      %p42 = scmp.eq.s32.totalorder %s16, 0
      %p43 = por %p41, %p42
      %s45 = sadd.s32 %s44, 1
      %p48 = scmp.eq.s32.totalorder %s10, 1
      %p49 = scmp.ne.s32.totalorder %s44, %s46
      %p50 = scmp.eq.s32.totalorder %s10, 0
      %p51 = por %p49, %p50
      %p52 = scmp.ne.s32.totalorder %s44, %s46
      %p53 = scmp.eq.s32.totalorder %s15, 1
      %p54 = por %p52, %p53
      %p55 = scmp.ne.s32.totalorder %s46, %s47
      %p56 = scmp.eq.s32.totalorder %s15, 0
      %p57 = por %p55, %p56
      %p58 = scmp.ne.s32.totalorder %s46, %s47
      %p59 = scmp.eq.s32.totalorder %s16, 1
      %p60 = por %p58, %p59
      %p62 = scmp.ne.s32.totalorder %s47, %s61
      %p63 = scmp.eq.s32.totalorder %s16, 0
      %p64 = por %p62, %p63
      %s66 = sadd.s32 %s65, 1
      %p69 = scmp.eq.s32.totalorder %s10, 1
      %p70 = scmp.ne.s32.totalorder %s65, %s67
      %p71 = scmp.eq.s32.totalorder %s10, 0
      %p72 = por %p70, %p71
      %p73 = scmp.ne.s32.totalorder %s65, %s67
      %p74 = scmp.eq.s32.totalorder %s15, 1
      %p75 = por %p73, %p74
      %p76 = scmp.ne.s32.totalorder %s67, %s68
      %p77 = scmp.eq.s32.totalorder %s15, 0
      %p78 = por %p76, %p77
      %p79 = scmp.ne.s32.totalorder %s67, %s68
      %p80 = scmp.eq.s32.totalorder %s16, 1
      %p81 = por %p79, %p80
      %p83 = scmp.ne.s32.totalorder %s68, %s82
      %p84 = scmp.eq.s32.totalorder %s16, 0
      %p85 = por %p83, %p84
      %s87 = sadd.s32 %s86, 1
      %p90 = scmp.eq.s32.totalorder %s10, 1
      %p91 = scmp.ne.s32.totalorder %s86, %s88
      %p92 = scmp.eq.s32.totalorder %s10, 0
      %p93 = por %p91, %p92
      %p94 = scmp.ne.s32.totalorder %s86, %s88
      %p95 = scmp.eq.s32.totalorder %s15, 1
      %p96 = por %p94, %p95
      %p97 = scmp.ne.s32.totalorder %s88, %s89
      %p98 = scmp.eq.s32.totalorder %s15, 0
      %p99 = por %p97, %p98
      %p100 = scmp.ne.s32.totalorder %s88, %s89
      %p101 = scmp.eq.s32.totalorder %s16, 1
      %p102 = por %p100, %p101
      %p104 = scmp.ne.s32.totalorder %s89, %s103
      %p105 = scmp.eq.s32.totalorder %s16, 0
      %p106 = por %p104, %p105
      %s107 = ssub.s32 %s10, %s17
      %p108 = scmp.eq.s32.totalorder %s107, 0
      %s110 = sadd.s32 %s109, 1
      %s111 = scalar_select %p108, %s109, %s110
      %p114 = pneg %p108
      %p115 = scmp.eq.s32.totalorder %s10, 1
      %p116 = por %p114, %p115
      %p117 = scmp.ne.s32.totalorder %s109, %s112
      %p118 = scmp.eq.s32.totalorder %s10, 0
      %p119 = por %p117, %p118
      %p120 = scmp.ne.s32.totalorder %s109, %s112
      %p121 = scmp.eq.s32.totalorder %s15, 1
      %p122 = por %p120, %p121
      %p123 = scmp.ne.s32.totalorder %s112, %s113
      %p124 = scmp.eq.s32.totalorder %s15, 0
      %p125 = por %p123, %p124
      %p126 = scmp.ne.s32.totalorder %s112, %s113
      %p127 = scmp.eq.s32.totalorder %s16, 1
      %p128 = por %p126, %p127
      %p130 = scmp.ne.s32.totalorder %s113, %s129
      %p131 = scmp.eq.s32.totalorder %s16, 0
      %p132 = por %p130, %p131
      %p133 = scmp.le.s32.totalorder 1, %s10
      %p134 = scmp.lt.s32.totalorder %s10, 3
      %p135 = pnand %p133, %p134
      %p136 = pneg %p135
      // Predicated region
      $region9: #{tpu_custom_call.1} parent=5 // pred_check
        _
      $region10: #{tpu_custom_call.1} parent=5 // pred_check_branch
        %138 = sbr.rel (%p135) target = $region12
      $region11: #{tpu_custom_call.1} parent=5 // pred_region
        %s139 = ssub.s32 %s10, 1
        // Predicated region
        $region13: #{tpu_custom_call.1} parent=11 // pred_check
          %p140 = pneg %p57
        $region14: #{tpu_custom_call.1} parent=11 // pred_check_branch
          %142 = sbr.rel (%p140) target = $region16
        $region15: #{tpu_custom_call.1} parent=11 // pred_region
          _
        $region16: #{tpu_custom_call.1} parent=11 // pred_fallthru
          _
        // Predicated region
        $region17: #{tpu_custom_call.1} parent=11 // pred_check
          %p143 = pneg %p78
        $region18: #{tpu_custom_call.1} parent=11 // pred_check_branch
          %145 = sbr.rel (%p143) target = $region20
        $region19: #{tpu_custom_call.1} parent=11 // pred_region
          _
        $region20: #{tpu_custom_call.1} parent=11 // pred_fallthru
          _
        // Predicated region
        $region21: #{tpu_custom_call.1} parent=11 // pred_check
          %p146 = pneg %p99
        $region22: #{tpu_custom_call.1} parent=11 // pred_check_branch
          %148 = sbr.rel (%p146) target = $region24
        $region23: #{tpu_custom_call.1} parent=11 // pred_region
          _
        $region24: #{tpu_custom_call.1} parent=11 // pred_fallthru
          _
      $region12: #{tpu_custom_call.1} parent=5 // pred_fallthru
        _
      %p149 = scmp.lt.s32.totalorder %s10, 2
      // Predicated region
      $region25: #{tpu_custom_call.1} parent=5 // pred_check
        %p150 = pneg %p149
      $region26: #{tpu_custom_call.1} parent=5 // pred_check_branch
        %152 = sbr.rel (%p150) target = $region28
      $region27: #{tpu_custom_call.1} parent=5 // pred_region
        // Predicated region
        $region29: #{tpu_custom_call.1} parent=27 // pred_check
          %p153 = pneg %p30
        $region30: #{tpu_custom_call.1} parent=27 // pred_check_branch
          %155 = sbr.rel (%p153) target = $region32
        $region31: #{tpu_custom_call.1} parent=27 // pred_region
          %s156 = smul.u32 32, %s10
          %s157 = ssub.s32 63, %s156
          %p158 = scmp.lt.s32.totalorder %s157, 32
          %s159 = scalar_select %p158, %s157, 32
          %s160 = smul.u32 128, %s159
          %p161 = scmp.lt.s32.totalorder %s156, 62
          %s162 = scalar_select %p161, %s156, 62
          %s163 = smul.addr %s162, 8
          %s164 = scalar_lea.vmem %s0, %s163
          %s165 = smul.u32 32, %s10
          %s166 = ssub.s32 63, %s165
          %p167 = scmp.lt.s32.totalorder %s166, 32
          %s168 = scalar_select %p167, %s166, 32
          %s169 = smul.u32 128, %s168
        $region32: #{tpu_custom_call.1} parent=27 // pred_fallthru
          _
      $region28: #{tpu_custom_call.1} parent=5 // pred_fallthru
        _
      %p170 = scmp.le.s32.totalorder 1, %s10
      %p171 = scmp.lt.s32.totalorder %s10, 3
      %p172 = pnand %p170, %p171
      %p173 = pneg %p172
      // Predicated region
      $region33: #{tpu_custom_call.1} parent=5 // pred_check
        _
      $region34: #{tpu_custom_call.1} parent=5 // pred_check_branch
        %175 = sbr.rel (%p172) target = $region36
      $region35: #{tpu_custom_call.1} parent=5 // pred_region
        %s176 = ssub.s32 %s10, 1
        %s177 = smul.u32 32, %s15
        %s178 = ssub.s32 63, %s177
        %p179 = scmp.lt.s32.totalorder %s178, 32
        %s180 = scalar_select %p179, %s178, 32
        %s181 = smul.u32 128, %s180
        %p182 = scmp.lt.s32.totalorder %s177, 62
        %s183 = scalar_select %p182, %s177, 62
        %s184 = smul.addr %s183, 8
        %s185 = scalar_lea.vmem %s0, %s184
        %p186 = pneg %p36
        %p187 = pneg %p33
        %p188 = pneg %p57
        %p189 = pneg %p54
        %p190 = pneg %p78
        %p191 = pneg %p75
        %p192 = pneg %p99
        %p193 = pneg %p96
        %p194 = pneg %p125
        %p195 = pneg %p122
        %s196 = sand.u32 %s112, 1
        %s197 = sand.u32 %s112, 1
        %s198 = smul.addr %s197, 256
        %s199 = scalar_lea.vmem [#allocation2], %s198
        %s200 = smul.u32 32, %s15
        %s201 = ssub.s32 63, %s200
        %p202 = scmp.lt.s32.totalorder %s201, 32
        %s203 = scalar_select %p202, %s201, 32
        %s204 = smul.u32 128, %s203
        %p205 = scmp.lt.s32.totalorder %s200, 62
        %s206 = scalar_select %p205, %s200, 62
        %s207 = smul.addr %s206, 8
        %s208 = scalar_lea.vmem %s0, %s207
        %s209 = smul.u32 32, %s15
        %s210 = ssub.s32 63, %s209
        %p211 = scmp.lt.s32.totalorder %s210, 32
        %s212 = scalar_select %p211, %s210, 32
        %s213 = smul.u32 128, %s212
        %s214 = smul.u32 32, %s15
        %s215 = ssub.s32 63, %s214
        %p216 = scmp.lt.s32.totalorder %s215, 32
        %s217 = scalar_select %p216, %s215, 32
        %s218 = smul.u32 128, %s217
        %v220 = vld [vmem:[%s208] sm:$0xff]
        %v221 = vld [vmem:[%s208 + $0x8] sm:$0xff]
        %v222 = vld [vmem:[%s208 + $0x10] sm:$0xff]
        %v223 = vld [vmem:[%s208 + $0x18] sm:$0xff]
        %v224 = vld [vmem:[%s208 + $0x20] sm:$0xff]
        %v225 = vld [vmem:[%s208 + $0x28] sm:$0xff]
        %v226 = vld [vmem:[%s208 + $0x30] sm:$0xff]
        %v227 = vld [vmem:[%s208 + $0x38] sm:$0xff]
        %v228 = vld [vmem:[%s208 + $0x40] sm:$0xff]
        %v229 = vld [vmem:[%s208 + $0x48] sm:$0xff]
        %v230 = vld [vmem:[%s208 + $0x50] sm:$0xff]
        %v231 = vld [vmem:[%s208 + $0x58] sm:$0xff]
        %v232 = vld [vmem:[%s208 + $0x60] sm:$0xff]
        %v233 = vld [vmem:[%s208 + $0x68] sm:$0xff]
        %v234 = vld [vmem:[%s208 + $0x70] sm:$0xff]
        %v235 = vld [vmem:[%s208 + $0x78] sm:$0xff]
        %v236 = vld [vmem:[%s208 + $0x80] sm:$0xff]
        %v237 = vld [vmem:[%s208 + $0x88] sm:$0xff]
        %v238 = vld [vmem:[%s208 + $0x90] sm:$0xff]
        %v239 = vld [vmem:[%s208 + $0x98] sm:$0xff]
        %v240 = vld [vmem:[%s208 + $0xa0] sm:$0xff]
        %v241 = vld [vmem:[%s208 + $0xa8] sm:$0xff]
        %v242 = vld [vmem:[%s208 + $0xb0] sm:$0xff]
        %v243 = vld [vmem:[%s208 + $0xb8] sm:$0xff]
        %v244 = vld [vmem:[%s208 + $0xc0] sm:$0xff]
        %v245 = vld [vmem:[%s208 + $0xc8] sm:$0xff]
        %v246 = vld [vmem:[%s208 + $0xd0] sm:$0xff]
        %v247 = vld [vmem:[%s208 + $0xd8] sm:$0xff]
        %v248 = vld [vmem:[%s208 + $0xe0] sm:$0xff]
        %v249 = vld [vmem:[%s208 + $0xe8] sm:$0xff]
        %v250 = vld [vmem:[%s208 + $0xf0] sm:$0xff]
        %v251 = vld [vmem:[%s208 + $0xf8] sm:$0xff]
        %v252 = vpack.c.bf16 %v221, %v220
        %v253 = vpack.c.bf16 %v223, %v222
        %v254 = vpack.c.bf16 %v225, %v224
        %v255 = vpack.c.bf16 %v227, %v226
        %v256 = vpack.c.bf16 %v229, %v228
        %v257 = vpack.c.bf16 %v231, %v230
        %v258 = vpack.c.bf16 %v233, %v232
        %v259 = vpack.c.bf16 %v235, %v234
        %v260 = vpack.c.bf16 %v237, %v236
        %v261 = vpack.c.bf16 %v239, %v238
        %v262 = vpack.c.bf16 %v241, %v240
        %v263 = vpack.c.bf16 %v243, %v242
        %v264 = vpack.c.bf16 %v245, %v244
        %v265 = vpack.c.bf16 %v247, %v246
        %v266 = vpack.c.bf16 %v249, %v248
        %v267 = vpack.c.bf16 %v251, %v250
        %v268 = vld [vmem:[%s1] sm:$0xf]
        %v269 = vld [vmem:[%s1 + $0x4] sm:$0xf]
        %v270 = vld [vmem:[%s1 + $0x8] sm:$0xf]
        %v271 = vld [vmem:[%s1 + $0xc] sm:$0xf]
        %v272 = vld [vmem:[%s1 + $0x10] sm:$0xf]
        %v273 = vld [vmem:[%s1 + $0x14] sm:$0xf]
        %v274 = vld [vmem:[%s1 + $0x18] sm:$0xf]
        %v275 = vld [vmem:[%s1 + $0x1c] sm:$0xf]
        %v276 = vld [vmem:[%s1 + $0x20] sm:$0xf]
        %v277 = vld [vmem:[%s2] sm:$0x1]
        %v279 = vlaneseq
        %v280 = vshrl.u32 %v279, 7
        %v281 = vsub.s32 0, %v280
        %v282 = vrot.slane %v277, %v281
        %v293 = vunpack.c.l.b16 %v268
        %v294 = vunpack.c.l.b16 %v269
        %v295 = vunpack.c.l.b16 %v270
        %v296 = vunpack.c.l.b16 %v271
        %v297 = vunpack.c.l.b16 %v272
        %v298 = vunpack.c.l.b16 %v273
        %v299 = vunpack.c.l.b16 %v274
        %v300 = vunpack.c.l.b16 %v275
        %v301 = vunpack.c.l.b16 %v276
        %v302 = vpack.c.b16 %v294, %v293
        %v303 = vpack.c.b16 %v296, %v295
        %v304 = vpack.c.b16 %v298, %v297
        %v305 = vpack.c.b16 %v300, %v299
        %v306 = vpack.c.b16 %v301, %v301
        %vm311 = vcmask 588800
        %v313 = vsel %vm311, %v252, 0
        %v316 = vsel %vm311, %v253, 0
        %v319 = vsel %vm311, %v254, 0
        %v322 = vsel %vm311, %v255, 0
        %v325 = vsel %vm311, %v256, 0
        %v328 = vsel %vm311, %v257, 0
        %v331 = vsel %vm311, %v258, 0
        %v334 = vsel %vm311, %v259, 0
        %v337 = vsel %vm311, %v260, 0
        %v340 = vsel %vm311, %v261, 0
        %v343 = vsel %vm311, %v262, 0
        %v346 = vsel %vm311, %v263, 0
        %v349 = vsel %vm311, %v264, 0
        %v352 = vsel %vm311, %v265, 0
        %v355 = vsel %vm311, %v266, 0
        %v358 = vsel %vm311, %v267, 0
        %vm360 = vcmask 1043456
        %v362 = vsel %vm360, %v306, 0
        %364 = vmatprep.subr.bf16.mxu0 0
        %365 = vmatpush1.bf16.msra.mxu0 %v302
        %366 = vmatprep.subr.bf16.mxu0 0
        %367 = vmatpush1.bf16.msra.mxu0 %v303
        %368 = vmatprep.subr.bf16.mxu0 0
        %369 = vmatpush1.bf16.msra.mxu0 %v304
        %370 = vmatprep.subr.bf16.mxu0 0
        %371 = vmatpush1.bf16.msra.mxu0 %v305
        %372 = vmatprep.subr.bf16.mxu0 0
        %373 = vmatpush1.bf16.msra.mxu0 %v362
        %374 = vmatprep.subr.bf16.mxu0 0
        %375 = vmatpush1.bf16.msra.mxu0 0
        %376 = vmatprep.subr.bf16.mxu0 0
        %377 = vmatpush1.bf16.msra.mxu0 0
        %378 = vmatprep.subr.bf16.mxu0 0
        %379 = vmatpush1.bf16.msra.mxu0 0
        %380 = vmatprep.subr.bf16.mxu0 0
        %381 = vmatpush1.bf16.msra.mxu0 0
        %382 = vmatprep.subr.bf16.mxu0 0
        %383 = vmatpush1.bf16.msra.mxu0 0
        %384 = vmatprep.subr.bf16.mxu0 0
        %385 = vmatpush1.bf16.msra.mxu0 0
        %386 = vmatprep.subr.bf16.mxu0 0
        %387 = vmatpush1.bf16.msra.mxu0 0
        %388 = vmatprep.subr.bf16.mxu0 0
        %389 = vmatpush1.bf16.msra.mxu0 0
        %390 = vmatprep.subr.bf16.mxu0 0
        %391 = vmatpush1.bf16.msra.mxu0 0
        %392 = vmatprep.subr.bf16.mxu0 0
        %393 = vmatpush1.bf16.msra.mxu0 0
        %394 = vmatprep.subr.bf16.mxu0 0
        %395 = vmatpush1.bf16.msra.mxu0 0
        %396 = vmatprep.mubr.bf16.mxu0 0
        %397 = vmatmul.mubr.bf16.gmra.mrb[0].mxu0 %v313
        %v398 = vpop.f32.mrb[0].mxu0
        %v399 = vadd.f32 %v282, %v398
        %v400 = vpop.f32.mrb[0].mxu0
        %v401 = vpop.f32.mrb[0].mxu0
        %v402 = vadd.f32 %v282, %v401
        %v403 = vpop.f32.mrb[0].mxu0
        %404 = vmatprep.mubr.bf16.mxu0 0
        %405 = vmatmul.mubr.bf16.gmra.mrb[0].mxu0 %v316
        %v406 = vpop.f32.mrb[0].mxu0
        %v407 = vadd.f32 %v282, %v406
        %v408 = vpop.f32.mrb[0].mxu0
        %v409 = vpop.f32.mrb[0].mxu0
        %v410 = vadd.f32 %v282, %v409
        %v411 = vpop.f32.mrb[0].mxu0
        %412 = vmatprep.mubr.bf16.mxu0 0
        %413 = vmatmul.mubr.bf16.gmra.mrb[0].mxu0 %v319
        %v414 = vpop.f32.mrb[0].mxu0
        %v415 = vadd.f32 %v282, %v414
        %v416 = vpop.f32.mrb[0].mxu0
        %v417 = vpop.f32.mrb[0].mxu0
        %v418 = vadd.f32 %v282, %v417
        %v419 = vpop.f32.mrb[0].mxu0
        %420 = vmatprep.mubr.bf16.mxu0 0
        %421 = vmatmul.mubr.bf16.gmra.mrb[0].mxu0 %v322
        %v422 = vpop.f32.mrb[0].mxu0
        %v423 = vadd.f32 %v282, %v422
        %v424 = vpop.f32.mrb[0].mxu0
        %v425 = vpop.f32.mrb[0].mxu0
        %v426 = vadd.f32 %v282, %v425
        %v427 = vpop.f32.mrb[0].mxu0
        %428 = vmatprep.mubr.bf16.mxu0 0
        %429 = vmatmul.mubr.bf16.gmra.mrb[0].mxu0 %v325
        %v430 = vpop.f32.mrb[0].mxu0
        %v431 = vadd.f32 %v282, %v430
        %v432 = vpop.f32.mrb[0].mxu0
        %v433 = vpop.f32.mrb[0].mxu0
        %v434 = vadd.f32 %v282, %v433
        %v435 = vpop.f32.mrb[0].mxu0
        %436 = vmatprep.mubr.bf16.mxu0 0
        %437 = vmatmul.mubr.bf16.gmra.mrb[0].mxu0 %v328
        %v438 = vpop.f32.mrb[0].mxu0
        %v439 = vadd.f32 %v282, %v438
        %v440 = vpop.f32.mrb[0].mxu0
        %v441 = vpop.f32.mrb[0].mxu0
        %v442 = vadd.f32 %v282, %v441
        %v443 = vpop.f32.mrb[0].mxu0
        %444 = vmatprep.mubr.bf16.mxu0 0
        %445 = vmatmul.mubr.bf16.gmra.mrb[0].mxu0 %v331
        %v446 = vpop.f32.mrb[0].mxu0
        %v447 = vadd.f32 %v282, %v446
        %v448 = vpop.f32.mrb[0].mxu0
        %v449 = vpop.f32.mrb[0].mxu0
        %v450 = vadd.f32 %v282, %v449
        %v451 = vpop.f32.mrb[0].mxu0
        %452 = vmatprep.mubr.bf16.mxu0 0
        %453 = vmatmul.mubr.bf16.gmra.mrb[0].mxu0 %v334
        %v454 = vpop.f32.mrb[0].mxu0
        %v455 = vadd.f32 %v282, %v454
        %v456 = vpop.f32.mrb[0].mxu0
        %v457 = vpop.f32.mrb[0].mxu0
        %v458 = vadd.f32 %v282, %v457
        %v459 = vpop.f32.mrb[0].mxu0
        %460 = vmatprep.mubr.bf16.mxu0 0
        %461 = vmatmul.mubr.bf16.gmra.mrb[0].mxu0 %v337
        %v462 = vpop.f32.mrb[0].mxu0
        %v463 = vadd.f32 %v282, %v462
        %v464 = vpop.f32.mrb[0].mxu0
        %v465 = vpop.f32.mrb[0].mxu0
        %v466 = vadd.f32 %v282, %v465
        %v467 = vpop.f32.mrb[0].mxu0
        %468 = vmatprep.mubr.bf16.mxu0 0
        %469 = vmatmul.mubr.bf16.gmra.mrb[0].mxu0 %v340
        %v470 = vpop.f32.mrb[0].mxu0
        %v471 = vadd.f32 %v282, %v470
        %v472 = vpop.f32.mrb[0].mxu0
        %v473 = vpop.f32.mrb[0].mxu0
        %v474 = vadd.f32 %v282, %v473
        %v475 = vpop.f32.mrb[0].mxu0
        %476 = vmatprep.mubr.bf16.mxu0 0
        %477 = vmatmul.mubr.bf16.gmra.mrb[0].mxu0 %v343
        %v478 = vpop.f32.mrb[0].mxu0
        %v479 = vadd.f32 %v282, %v478
        %v480 = vpop.f32.mrb[0].mxu0
        %v481 = vpop.f32.mrb[0].mxu0
        %v482 = vadd.f32 %v282, %v481
        %v483 = vpop.f32.mrb[0].mxu0
        %484 = vmatprep.mubr.bf16.mxu0 0
        %485 = vmatmul.mubr.bf16.gmra.mrb[0].mxu0 %v346
        %v486 = vpop.f32.mrb[0].mxu0
        %v487 = vadd.f32 %v282, %v486
        %v488 = vpop.f32.mrb[0].mxu0
        %v489 = vpop.f32.mrb[0].mxu0
        %v490 = vadd.f32 %v282, %v489
        %v491 = vpop.f32.mrb[0].mxu0
        %492 = vmatprep.mubr.bf16.mxu0 0
        %493 = vmatmul.mubr.bf16.gmra.mrb[0].mxu0 %v349
        %v494 = vpop.f32.mrb[0].mxu0
        %v495 = vadd.f32 %v282, %v494
        %v496 = vpop.f32.mrb[0].mxu0
        %v497 = vpop.f32.mrb[0].mxu0
        %v498 = vadd.f32 %v282, %v497
        %v499 = vpop.f32.mrb[0].mxu0
        %500 = vmatprep.mubr.bf16.mxu0 0
        %501 = vmatmul.mubr.bf16.gmra.mrb[0].mxu0 %v352
        %v502 = vpop.f32.mrb[0].mxu0
        %v503 = vadd.f32 %v282, %v502
        %v504 = vpop.f32.mrb[0].mxu0
        %v505 = vpop.f32.mrb[0].mxu0
        %v506 = vadd.f32 %v282, %v505
        %v507 = vpop.f32.mrb[0].mxu0
        %508 = vmatprep.mubr.bf16.mxu0 0
        %509 = vmatmul.mubr.bf16.gmra.mrb[0].mxu0 %v355
        %v510 = vpop.f32.mrb[0].mxu0
        %v511 = vadd.f32 %v282, %v510
        %v512 = vpop.f32.mrb[0].mxu0
        %v513 = vpop.f32.mrb[0].mxu0
        %v514 = vadd.f32 %v282, %v513
        %v515 = vpop.f32.mrb[0].mxu0
        %516 = vmatprep.mubr.bf16.mxu0 0
        %517 = vmatmul.mubr.bf16.gmra.mrb[0].mxu0 %v358
        %v518 = vpop.f32.mrb[0].mxu0
        %v519 = vadd.f32 %v282, %v518
        %v520 = vpop.f32.mrb[0].mxu0
        %v521 = vpop.f32.mrb[0].mxu0
        %v522 = vadd.f32 %v282, %v521
        %v523 = vpop.f32.mrb[0].mxu0
        %524 = vdwg.mxu0
        %557 = vrot.lane.b32.xlu0 %v399, 112
        %v558 = vpop.permute.xlu0 %557
        %559 = vrot.lane.b32.xlu0 %v402, 112
        %v560 = vpop.permute.xlu0 %559
        %561 = vrot.lane.b32.xlu0 %v407, 112
        %v562 = vpop.permute.xlu0 %561
        %563 = vrot.lane.b32.xlu0 %v410, 112
        %v564 = vpop.permute.xlu0 %563
        %565 = vrot.lane.b32.xlu0 %v415, 112
        %v566 = vpop.permute.xlu0 %565
        %567 = vrot.lane.b32.xlu0 %v418, 112
        %v568 = vpop.permute.xlu0 %567
        %569 = vrot.lane.b32.xlu0 %v423, 112
        %v570 = vpop.permute.xlu0 %569
        %571 = vrot.lane.b32.xlu0 %v426, 112
        %v572 = vpop.permute.xlu0 %571
        %573 = vrot.lane.b32.xlu0 %v431, 112
        %v574 = vpop.permute.xlu0 %573
        %575 = vrot.lane.b32.xlu0 %v434, 112
        %v576 = vpop.permute.xlu0 %575
        %577 = vrot.lane.b32.xlu0 %v439, 112
        %v578 = vpop.permute.xlu0 %577
        %579 = vrot.lane.b32.xlu0 %v442, 112
        %v580 = vpop.permute.xlu0 %579
        %581 = vrot.lane.b32.xlu0 %v447, 112
        %v582 = vpop.permute.xlu0 %581
        %583 = vrot.lane.b32.xlu0 %v450, 112
        %v584 = vpop.permute.xlu0 %583
        %585 = vrot.lane.b32.xlu0 %v455, 112
        %v586 = vpop.permute.xlu0 %585
        %587 = vrot.lane.b32.xlu0 %v458, 112
        %v588 = vpop.permute.xlu0 %587
        %589 = vrot.lane.b32.xlu0 %v463, 112
        %v590 = vpop.permute.xlu0 %589
        %591 = vrot.lane.b32.xlu0 %v466, 112
        %v592 = vpop.permute.xlu0 %591
        %593 = vrot.lane.b32.xlu0 %v471, 112
        %v594 = vpop.permute.xlu0 %593
        %595 = vrot.lane.b32.xlu0 %v474, 112
        %v596 = vpop.permute.xlu0 %595
        %597 = vrot.lane.b32.xlu0 %v479, 112
        %v598 = vpop.permute.xlu0 %597
        %599 = vrot.lane.b32.xlu0 %v482, 112
        %v600 = vpop.permute.xlu0 %599
        %601 = vrot.lane.b32.xlu0 %v487, 112
        %v602 = vpop.permute.xlu0 %601
        %603 = vrot.lane.b32.xlu0 %v490, 112
        %v604 = vpop.permute.xlu0 %603
        %605 = vrot.lane.b32.xlu0 %v495, 112
        %v606 = vpop.permute.xlu0 %605
        %607 = vrot.lane.b32.xlu0 %v498, 112
        %v608 = vpop.permute.xlu0 %607
        %609 = vrot.lane.b32.xlu0 %v503, 112
        %v610 = vpop.permute.xlu0 %609
        %611 = vrot.lane.b32.xlu0 %v506, 112
        %v612 = vpop.permute.xlu0 %611
        %613 = vrot.lane.b32.xlu0 %v511, 112
        %v614 = vpop.permute.xlu0 %613
        %615 = vrot.lane.b32.xlu0 %v514, 112
        %v616 = vpop.permute.xlu0 %615
        %617 = vrot.lane.b32.xlu0 %v519, 112
        %v618 = vpop.permute.xlu0 %617
        %619 = vrot.lane.b32.xlu0 %v522, 112
        %v620 = vpop.permute.xlu0 %619
        %v653 = vmax.f32 %v399, %v558
        %v654 = vmax.f32 %v402, %v560
        %v655 = vmax.f32 %v407, %v562
        %v656 = vmax.f32 %v410, %v564
        %v657 = vmax.f32 %v415, %v566
        %v658 = vmax.f32 %v418, %v568
        %v659 = vmax.f32 %v423, %v570
        %v660 = vmax.f32 %v426, %v572
        %v661 = vmax.f32 %v431, %v574
        %v662 = vmax.f32 %v434, %v576
        %v663 = vmax.f32 %v439, %v578
        %v664 = vmax.f32 %v442, %v580
        %v665 = vmax.f32 %v447, %v582
        %v666 = vmax.f32 %v450, %v584
        %v667 = vmax.f32 %v455, %v586
        %v668 = vmax.f32 %v458, %v588
        %v669 = vmax.f32 %v463, %v590
        %v670 = vmax.f32 %v466, %v592
        %v671 = vmax.f32 %v471, %v594
        %v672 = vmax.f32 %v474, %v596
        %v673 = vmax.f32 %v479, %v598
        %v674 = vmax.f32 %v482, %v600
        %v675 = vmax.f32 %v487, %v602
        %v676 = vmax.f32 %v490, %v604
        %v677 = vmax.f32 %v495, %v606
        %v678 = vmax.f32 %v498, %v608
        %v679 = vmax.f32 %v503, %v610
        %v680 = vmax.f32 %v506, %v612
        %v681 = vmax.f32 %v511, %v614
        %v682 = vmax.f32 %v514, %v616
        %v683 = vmax.f32 %v519, %v618
        %v684 = vmax.f32 %v522, %v620
        %v685 = vmax.f32 %v653, 0.0
        %v686 = vmax.f32 %v654, 0.0
        %v687 = vmax.f32 %v655, 0.0
        %v688 = vmax.f32 %v656, 0.0
        %v689 = vmax.f32 %v657, 0.0
        %v690 = vmax.f32 %v658, 0.0
        %v691 = vmax.f32 %v659, 0.0
        %v692 = vmax.f32 %v660, 0.0
        %v693 = vmax.f32 %v661, 0.0
        %v694 = vmax.f32 %v662, 0.0
        %v695 = vmax.f32 %v663, 0.0
        %v696 = vmax.f32 %v664, 0.0
        %v697 = vmax.f32 %v665, 0.0
        %v698 = vmax.f32 %v666, 0.0
        %v699 = vmax.f32 %v667, 0.0
        %v700 = vmax.f32 %v668, 0.0
        %v701 = vmax.f32 %v669, 0.0
        %v702 = vmax.f32 %v670, 0.0
        %v703 = vmax.f32 %v671, 0.0
        %v704 = vmax.f32 %v672, 0.0
        %v705 = vmax.f32 %v673, 0.0
        %v706 = vmax.f32 %v674, 0.0
        %v707 = vmax.f32 %v675, 0.0
        %v708 = vmax.f32 %v676, 0.0
        %v709 = vmax.f32 %v677, 0.0
        %v710 = vmax.f32 %v678, 0.0
        %v711 = vmax.f32 %v679, 0.0
        %v712 = vmax.f32 %v680, 0.0
        %v713 = vmax.f32 %v681, 0.0
        %v714 = vmax.f32 %v682, 0.0
        %v715 = vmax.f32 %v683, 0.0
        %v716 = vmax.f32 %v684, 0.0
        %v717 = vpack.c.bf16 %v686, %v685
        %v718 = vpack.c.bf16 %v688, %v687
        %v719 = vpack.c.bf16 %v690, %v689
        %v720 = vpack.c.bf16 %v692, %v691
        %v721 = vpack.c.bf16 %v694, %v693
        %v722 = vpack.c.bf16 %v696, %v695
        %v723 = vpack.c.bf16 %v698, %v697
        %v724 = vpack.c.bf16 %v700, %v699
        %v725 = vpack.c.bf16 %v702, %v701
        %v726 = vpack.c.bf16 %v704, %v703
        %v727 = vpack.c.bf16 %v706, %v705
        %v728 = vpack.c.bf16 %v708, %v707
        %v729 = vpack.c.bf16 %v710, %v709
        %v730 = vpack.c.bf16 %v712, %v711
        %v731 = vpack.c.bf16 %v714, %v713
        %v732 = vpack.c.bf16 %v716, %v715
        %v733 = vld [vmem:[%s3] sm:$0xf]
        %v734 = vld [vmem:[%s3 + $0x4] sm:$0xf]
        %v737 = vunpack.c.l.b16 %v733
        %v738 = vunpack.c.l.b16 %v734
        %v739 = vpack.c.b16 %v738, %v737
        %vm741 = vcmask 130048
        %v743 = vsel %vm741, %v717, 0
        %v746 = vsel %vm741, %v718, 0
        %v749 = vsel %vm741, %v719, 0
        %v752 = vsel %vm741, %v720, 0
        %v755 = vsel %vm741, %v721, 0
        %v758 = vsel %vm741, %v722, 0
        %v761 = vsel %vm741, %v723, 0
        %v764 = vsel %vm741, %v724, 0
        %v767 = vsel %vm741, %v725, 0
        %v770 = vsel %vm741, %v726, 0
        %v773 = vsel %vm741, %v727, 0
        %v776 = vsel %vm741, %v728, 0
        %v779 = vsel %vm741, %v729, 0
        %v782 = vsel %vm741, %v730, 0
        %v785 = vsel %vm741, %v731, 0
        %v788 = vsel %vm741, %v732, 0
        %790 = vmatprep.subr.bf16.mxu0 0
        %791 = vmatpush1.bf16.msra.mxu0 %v739
        %792 = vmatprep.subr.bf16.mxu0 0
        %793 = vmatpush1.bf16.msra.mxu0 0
        %794 = vmatprep.subr.bf16.mxu0 0
        %795 = vmatpush1.bf16.msra.mxu0 0
        %796 = vmatprep.subr.bf16.mxu0 0
        %797 = vmatpush1.bf16.msra.mxu0 0
        %798 = vmatprep.subr.bf16.mxu0 0
        %799 = vmatpush1.bf16.msra.mxu0 0
        %800 = vmatprep.subr.bf16.mxu0 0
        %801 = vmatpush1.bf16.msra.mxu0 0
        %802 = vmatprep.subr.bf16.mxu0 0
        %803 = vmatpush1.bf16.msra.mxu0 0
        %804 = vmatprep.subr.bf16.mxu0 0
        %805 = vmatpush1.bf16.msra.mxu0 0
        %806 = vmatprep.subr.bf16.mxu0 0
        %807 = vmatpush1.bf16.msra.mxu0 0
        %808 = vmatprep.subr.bf16.mxu0 0
        %809 = vmatpush1.bf16.msra.mxu0 0
        %810 = vmatprep.subr.bf16.mxu0 0
        %811 = vmatpush1.bf16.msra.mxu0 0
        %812 = vmatprep.subr.bf16.mxu0 0
        %813 = vmatpush1.bf16.msra.mxu0 0
        %814 = vmatprep.subr.bf16.mxu0 0
        %815 = vmatpush1.bf16.msra.mxu0 0
        %816 = vmatprep.subr.bf16.mxu0 0
        %817 = vmatpush1.bf16.msra.mxu0 0
        %818 = vmatprep.subr.bf16.mxu0 0
        %819 = vmatpush1.bf16.msra.mxu0 0
        %820 = vmatprep.subr.bf16.mxu0 0
        %821 = vmatpush1.bf16.msra.mxu0 0
        %822 = vmatprep.mubr.bf16.mxu0 0
        %823 = vmatmul.mubr.bf16.gmra.mrb[0].mxu0 %v743
        %v824 = vpop.f32.mrb[0].mxu0
        %v825 = vadd.f32 0.0, %v824
        %v826 = vpop.f32.mrb[0].mxu0
        %v827 = vpop.f32.mrb[0].mxu0
        %v828 = vadd.f32 0.0, %v827
        %v829 = vpop.f32.mrb[0].mxu0
        %830 = vmatprep.mubr.bf16.mxu0 0
        %831 = vmatmul.mubr.bf16.gmra.mrb[0].mxu0 %v746
        %v832 = vpop.f32.mrb[0].mxu0
        %v833 = vadd.f32 0.0, %v832
        %v834 = vpop.f32.mrb[0].mxu0
        %v835 = vpop.f32.mrb[0].mxu0
        %v836 = vadd.f32 0.0, %v835
        %v837 = vpop.f32.mrb[0].mxu0
        %838 = vmatprep.mubr.bf16.mxu0 0
        %839 = vmatmul.mubr.bf16.gmra.mrb[0].mxu0 %v749
        %v840 = vpop.f32.mrb[0].mxu0
        %v841 = vadd.f32 0.0, %v840
        %v842 = vpop.f32.mrb[0].mxu0
        %v843 = vpop.f32.mrb[0].mxu0
        %v844 = vadd.f32 0.0, %v843
        %v845 = vpop.f32.mrb[0].mxu0
        %846 = vmatprep.mubr.bf16.mxu0 0
        %847 = vmatmul.mubr.bf16.gmra.mrb[0].mxu0 %v752
        %v848 = vpop.f32.mrb[0].mxu0
        %v849 = vadd.f32 0.0, %v848
        %v850 = vpop.f32.mrb[0].mxu0
        %v851 = vpop.f32.mrb[0].mxu0
        %v852 = vadd.f32 0.0, %v851
        %v853 = vpop.f32.mrb[0].mxu0
        %854 = vmatprep.mubr.bf16.mxu0 0
        %855 = vmatmul.mubr.bf16.gmra.mrb[0].mxu0 %v755
        %v856 = vpop.f32.mrb[0].mxu0
        %v857 = vadd.f32 0.0, %v856
        %v858 = vpop.f32.mrb[0].mxu0
        %v859 = vpop.f32.mrb[0].mxu0
        %v860 = vadd.f32 0.0, %v859
        %v861 = vpop.f32.mrb[0].mxu0
        %862 = vmatprep.mubr.bf16.mxu0 0
        %863 = vmatmul.mubr.bf16.gmra.mrb[0].mxu0 %v758
        %v864 = vpop.f32.mrb[0].mxu0
        %v865 = vadd.f32 0.0, %v864
        %v866 = vpop.f32.mrb[0].mxu0
        %v867 = vpop.f32.mrb[0].mxu0
        %v868 = vadd.f32 0.0, %v867
        %v869 = vpop.f32.mrb[0].mxu0
        %870 = vmatprep.mubr.bf16.mxu0 0
        %871 = vmatmul.mubr.bf16.gmra.mrb[0].mxu0 %v761
        %v872 = vpop.f32.mrb[0].mxu0
        %v873 = vadd.f32 0.0, %v872
        %v874 = vpop.f32.mrb[0].mxu0
        %v875 = vpop.f32.mrb[0].mxu0
        %v876 = vadd.f32 0.0, %v875
        %v877 = vpop.f32.mrb[0].mxu0
        %878 = vmatprep.mubr.bf16.mxu0 0
        %879 = vmatmul.mubr.bf16.gmra.mrb[0].mxu0 %v764
        %v880 = vpop.f32.mrb[0].mxu0
        %v881 = vadd.f32 0.0, %v880
        %v882 = vpop.f32.mrb[0].mxu0
        %v883 = vpop.f32.mrb[0].mxu0
        %v884 = vadd.f32 0.0, %v883
        %v885 = vpop.f32.mrb[0].mxu0
        %886 = vmatprep.mubr.bf16.mxu0 0
        %887 = vmatmul.mubr.bf16.gmra.mrb[0].mxu0 %v767
        %v888 = vpop.f32.mrb[0].mxu0
        %v889 = vadd.f32 0.0, %v888
        %v890 = vpop.f32.mrb[0].mxu0
        %v891 = vpop.f32.mrb[0].mxu0
        %v892 = vadd.f32 0.0, %v891
        %v893 = vpop.f32.mrb[0].mxu0
        %894 = vmatprep.mubr.bf16.mxu0 0
        %895 = vmatmul.mubr.bf16.gmra.mrb[0].mxu0 %v770
        %v896 = vpop.f32.mrb[0].mxu0
        %v897 = vadd.f32 0.0, %v896
        %v898 = vpop.f32.mrb[0].mxu0
        %v899 = vpop.f32.mrb[0].mxu0
        %v900 = vadd.f32 0.0, %v899
        %v901 = vpop.f32.mrb[0].mxu0
        %902 = vmatprep.mubr.bf16.mxu0 0
        %903 = vmatmul.mubr.bf16.gmra.mrb[0].mxu0 %v773
        %v904 = vpop.f32.mrb[0].mxu0
        %v905 = vadd.f32 0.0, %v904
        %v906 = vpop.f32.mrb[0].mxu0
        %v907 = vpop.f32.mrb[0].mxu0
        %v908 = vadd.f32 0.0, %v907
        %v909 = vpop.f32.mrb[0].mxu0
        %910 = vmatprep.mubr.bf16.mxu0 0
        %911 = vmatmul.mubr.bf16.gmra.mrb[0].mxu0 %v776
        %v912 = vpop.f32.mrb[0].mxu0
        %v913 = vadd.f32 0.0, %v912
        %v914 = vpop.f32.mrb[0].mxu0
        %v915 = vpop.f32.mrb[0].mxu0
        %v916 = vadd.f32 0.0, %v915
        %v917 = vpop.f32.mrb[0].mxu0
        %918 = vmatprep.mubr.bf16.mxu0 0
        %919 = vmatmul.mubr.bf16.gmra.mrb[0].mxu0 %v779
        %v920 = vpop.f32.mrb[0].mxu0
        %v921 = vadd.f32 0.0, %v920
        %v922 = vpop.f32.mrb[0].mxu0
        %v923 = vpop.f32.mrb[0].mxu0
        %v924 = vadd.f32 0.0, %v923
        %v925 = vpop.f32.mrb[0].mxu0
        %926 = vmatprep.mubr.bf16.mxu0 0
        %927 = vmatmul.mubr.bf16.gmra.mrb[0].mxu0 %v782
        %v928 = vpop.f32.mrb[0].mxu0
        %v929 = vadd.f32 0.0, %v928
        %v930 = vpop.f32.mrb[0].mxu0
        %v931 = vpop.f32.mrb[0].mxu0
        %v932 = vadd.f32 0.0, %v931
        %v933 = vpop.f32.mrb[0].mxu0
        %934 = vmatprep.mubr.bf16.mxu0 0
        %935 = vmatmul.mubr.bf16.gmra.mrb[0].mxu0 %v785
        %v936 = vpop.f32.mrb[0].mxu0
        %v937 = vadd.f32 0.0, %v936
        %v938 = vpop.f32.mrb[0].mxu0
        %v939 = vpop.f32.mrb[0].mxu0
        %v940 = vadd.f32 0.0, %v939
        %v941 = vpop.f32.mrb[0].mxu0
        %942 = vmatprep.mubr.bf16.mxu0 0
        %943 = vmatmul.mubr.bf16.gmra.mrb[0].mxu0 %v788
        %v944 = vpop.f32.mrb[0].mxu0
        %v945 = vadd.f32 0.0, %v944
        %v946 = vpop.f32.mrb[0].mxu0
        %v947 = vpop.f32.mrb[0].mxu0
        %v948 = vadd.f32 0.0, %v947
        %v949 = vpop.f32.mrb[0].mxu0
        %950 = vdwg.mxu0
        %v951 = vmax.f32 %v825, 0.0
        %v952 = vmax.f32 %v828, 0.0
        %v953 = vmax.f32 %v833, 0.0
        %v954 = vmax.f32 %v836, 0.0
        %v955 = vmax.f32 %v841, 0.0
        %v956 = vmax.f32 %v844, 0.0
        %v957 = vmax.f32 %v849, 0.0
        %v958 = vmax.f32 %v852, 0.0
        %v959 = vmax.f32 %v857, 0.0
        %v960 = vmax.f32 %v860, 0.0
        %v961 = vmax.f32 %v865, 0.0
        %v962 = vmax.f32 %v868, 0.0
        %v963 = vmax.f32 %v873, 0.0
        %v964 = vmax.f32 %v876, 0.0
        %v965 = vmax.f32 %v881, 0.0
        %v966 = vmax.f32 %v884, 0.0
        %v967 = vmax.f32 %v889, 0.0
        %v968 = vmax.f32 %v892, 0.0
        %v969 = vmax.f32 %v897, 0.0
        %v970 = vmax.f32 %v900, 0.0
        %v971 = vmax.f32 %v905, 0.0
        %v972 = vmax.f32 %v908, 0.0
        %v973 = vmax.f32 %v913, 0.0
        %v974 = vmax.f32 %v916, 0.0
        %v975 = vmax.f32 %v921, 0.0
        %v976 = vmax.f32 %v924, 0.0
        %v977 = vmax.f32 %v929, 0.0
        %v978 = vmax.f32 %v932, 0.0
        %v979 = vmax.f32 %v937, 0.0
        %v980 = vmax.f32 %v940, 0.0
        %v981 = vmax.f32 %v945, 0.0
        %v982 = vmax.f32 %v948, 0.0
        %v983 = vsub.f32 0.0, %v951
        %v984 = vsub.f32 0.0, %v952
        %v985 = vsub.f32 0.0, %v953
        %v986 = vsub.f32 0.0, %v954
        %v987 = vsub.f32 0.0, %v955
        %v988 = vsub.f32 0.0, %v956
        %v989 = vsub.f32 0.0, %v957
        %v990 = vsub.f32 0.0, %v958
        %v991 = vsub.f32 0.0, %v959
        %v992 = vsub.f32 0.0, %v960
        %v993 = vsub.f32 0.0, %v961
        %v994 = vsub.f32 0.0, %v962
        %v995 = vsub.f32 0.0, %v963
        %v996 = vsub.f32 0.0, %v964
        %v997 = vsub.f32 0.0, %v965
        %v998 = vsub.f32 0.0, %v966
        %v999 = vsub.f32 0.0, %v967
        %v1000 = vsub.f32 0.0, %v968
        %v1001 = vsub.f32 0.0, %v969
        %v1002 = vsub.f32 0.0, %v970
        %v1003 = vsub.f32 0.0, %v971
        %v1004 = vsub.f32 0.0, %v972
        %v1005 = vsub.f32 0.0, %v973
        %v1006 = vsub.f32 0.0, %v974
        %v1007 = vsub.f32 0.0, %v975
        %v1008 = vsub.f32 0.0, %v976
        %v1009 = vsub.f32 0.0, %v977
        %v1010 = vsub.f32 0.0, %v978
        %v1011 = vsub.f32 0.0, %v979
        %v1012 = vsub.f32 0.0, %v980
        %v1013 = vsub.f32 0.0, %v981
        %v1014 = vsub.f32 0.0, %v982
        %v1015 = vmul.f32 %v983, 1.442695
        %v1016 = vpow.pop %v1015
        %v1017 = vmul.f32 %v984, 1.442695
        %v1018 = vpow.pop %v1017
        %v1019 = vmul.f32 %v985, 1.442695
        %v1020 = vpow.pop %v1019
        %v1021 = vmul.f32 %v986, 1.442695
        %v1022 = vpow.pop %v1021
        %v1023 = vmul.f32 %v987, 1.442695
        %v1024 = vpow.pop %v1023
        %v1025 = vmul.f32 %v988, 1.442695
        %v1026 = vpow.pop %v1025
        %v1027 = vmul.f32 %v989, 1.442695
        %v1028 = vpow.pop %v1027
        %v1029 = vmul.f32 %v990, 1.442695
        %v1030 = vpow.pop %v1029
        %v1031 = vmul.f32 %v991, 1.442695
        %v1032 = vpow.pop %v1031
        %v1033 = vmul.f32 %v992, 1.442695
        %v1034 = vpow.pop %v1033
        %v1035 = vmul.f32 %v993, 1.442695
        %v1036 = vpow.pop %v1035
        %v1037 = vmul.f32 %v994, 1.442695
        %v1038 = vpow.pop %v1037
        %v1039 = vmul.f32 %v995, 1.442695
        %v1040 = vpow.pop %v1039
        %v1041 = vmul.f32 %v996, 1.442695
        %v1042 = vpow.pop %v1041
        %v1043 = vmul.f32 %v997, 1.442695
        %v1044 = vpow.pop %v1043
        %v1045 = vmul.f32 %v998, 1.442695
        %v1046 = vpow.pop %v1045
        %v1047 = vmul.f32 %v999, 1.442695
        %v1048 = vpow.pop %v1047
        %v1049 = vmul.f32 %v1000, 1.442695
        %v1050 = vpow.pop %v1049
        %v1051 = vmul.f32 %v1001, 1.442695
        %v1052 = vpow.pop %v1051
        %v1053 = vmul.f32 %v1002, 1.442695
        %v1054 = vpow.pop %v1053
        %v1055 = vmul.f32 %v1003, 1.442695
        %v1056 = vpow.pop %v1055
        %v1057 = vmul.f32 %v1004, 1.442695
        %v1058 = vpow.pop %v1057
        %v1059 = vmul.f32 %v1005, 1.442695
        %v1060 = vpow.pop %v1059
        %v1061 = vmul.f32 %v1006, 1.442695
        %v1062 = vpow.pop %v1061
        %v1063 = vmul.f32 %v1007, 1.442695
        %v1064 = vpow.pop %v1063
        %v1065 = vmul.f32 %v1008, 1.442695
        %v1066 = vpow.pop %v1065
        %v1067 = vmul.f32 %v1009, 1.442695
        %v1068 = vpow.pop %v1067
        %v1069 = vmul.f32 %v1010, 1.442695
        %v1070 = vpow.pop %v1069
        %v1071 = vmul.f32 %v1011, 1.442695
        %v1072 = vpow.pop %v1071
        %v1073 = vmul.f32 %v1012, 1.442695
        %v1074 = vpow.pop %v1073
        %v1075 = vmul.f32 %v1013, 1.442695
        %v1076 = vpow.pop %v1075
        %v1077 = vmul.f32 %v1014, 1.442695
        %v1078 = vpow.pop %v1077
        %v1079 = vadd.f32 %v1016, 1.0
        %v1080 = vadd.f32 %v1018, 1.0
        %v1081 = vadd.f32 %v1020, 1.0
        %v1082 = vadd.f32 %v1022, 1.0
        %v1083 = vadd.f32 %v1024, 1.0
        %v1084 = vadd.f32 %v1026, 1.0
        %v1085 = vadd.f32 %v1028, 1.0
        %v1086 = vadd.f32 %v1030, 1.0
        %v1087 = vadd.f32 %v1032, 1.0
        %v1088 = vadd.f32 %v1034, 1.0
        %v1089 = vadd.f32 %v1036, 1.0
        %v1090 = vadd.f32 %v1038, 1.0
        %v1091 = vadd.f32 %v1040, 1.0
        %v1092 = vadd.f32 %v1042, 1.0
        %v1093 = vadd.f32 %v1044, 1.0
        %v1094 = vadd.f32 %v1046, 1.0
        %v1095 = vadd.f32 %v1048, 1.0
        %v1096 = vadd.f32 %v1050, 1.0
        %v1097 = vadd.f32 %v1052, 1.0
        %v1098 = vadd.f32 %v1054, 1.0
        %v1099 = vadd.f32 %v1056, 1.0
        %v1100 = vadd.f32 %v1058, 1.0
        %v1101 = vadd.f32 %v1060, 1.0
        %v1102 = vadd.f32 %v1062, 1.0
        %v1103 = vadd.f32 %v1064, 1.0
        %v1104 = vadd.f32 %v1066, 1.0
        %v1105 = vadd.f32 %v1068, 1.0
        %v1106 = vadd.f32 %v1070, 1.0
        %v1107 = vadd.f32 %v1072, 1.0
        %v1108 = vadd.f32 %v1074, 1.0
        %v1109 = vadd.f32 %v1076, 1.0
        %v1110 = vadd.f32 %v1078, 1.0
        %v1111 = vrcp.pop %v1079
        %v1112 = vrcp.pop %v1080
        %v1113 = vrcp.pop %v1081
        %v1114 = vrcp.pop %v1082
        %v1115 = vrcp.pop %v1083
        %v1116 = vrcp.pop %v1084
        %v1117 = vrcp.pop %v1085
        %v1118 = vrcp.pop %v1086
        %v1119 = vrcp.pop %v1087
        %v1120 = vrcp.pop %v1088
        %v1121 = vrcp.pop %v1089
        %v1122 = vrcp.pop %v1090
        %v1123 = vrcp.pop %v1091
        %v1124 = vrcp.pop %v1092
        %v1125 = vrcp.pop %v1093
        %v1126 = vrcp.pop %v1094
        %v1127 = vrcp.pop %v1095
        %v1128 = vrcp.pop %v1096
        %v1129 = vrcp.pop %v1097
        %v1130 = vrcp.pop %v1098
        %v1131 = vrcp.pop %v1099
        %v1132 = vrcp.pop %v1100
        %v1133 = vrcp.pop %v1101
        %v1134 = vrcp.pop %v1102
        %v1135 = vrcp.pop %v1103
        %v1136 = vrcp.pop %v1104
        %v1137 = vrcp.pop %v1105
        %v1138 = vrcp.pop %v1106
        %v1139 = vrcp.pop %v1107
        %v1140 = vrcp.pop %v1108
        %v1141 = vrcp.pop %v1109
        %v1142 = vrcp.pop %v1110
        %vm1143 = vcmask 15360
        %1144 = vst.msk [vmem:[%s199] sm:$0xff] %vm1143, %v1111
        %1145 = vst.msk [vmem:[%s199 + $0x8] sm:$0xff] %vm1143, %v1112
        %1146 = vst.msk [vmem:[%s199 + $0x10] sm:$0xff] %vm1143, %v1113
        %1147 = vst.msk [vmem:[%s199 + $0x18] sm:$0xff] %vm1143, %v1114
        %1148 = vst.msk [vmem:[%s199 + $0x20] sm:$0xff] %vm1143, %v1115
        %1149 = vst.msk [vmem:[%s199 + $0x28] sm:$0xff] %vm1143, %v1116
        %1150 = vst.msk [vmem:[%s199 + $0x30] sm:$0xff] %vm1143, %v1117
        %1151 = vst.msk [vmem:[%s199 + $0x38] sm:$0xff] %vm1143, %v1118
        %1152 = vst.msk [vmem:[%s199 + $0x40] sm:$0xff] %vm1143, %v1119
        %1153 = vst.msk [vmem:[%s199 + $0x48] sm:$0xff] %vm1143, %v1120
        %1154 = vst.msk [vmem:[%s199 + $0x50] sm:$0xff] %vm1143, %v1121
        %1155 = vst.msk [vmem:[%s199 + $0x58] sm:$0xff] %vm1143, %v1122
        %1156 = vst.msk [vmem:[%s199 + $0x60] sm:$0xff] %vm1143, %v1123
        %1157 = vst.msk [vmem:[%s199 + $0x68] sm:$0xff] %vm1143, %v1124
        %1158 = vst.msk [vmem:[%s199 + $0x70] sm:$0xff] %vm1143, %v1125
        %1159 = vst.msk [vmem:[%s199 + $0x78] sm:$0xff] %vm1143, %v1126
        %1160 = vst.msk [vmem:[%s199 + $0x80] sm:$0xff] %vm1143, %v1127
        %1161 = vst.msk [vmem:[%s199 + $0x88] sm:$0xff] %vm1143, %v1128
        %1162 = vst.msk [vmem:[%s199 + $0x90] sm:$0xff] %vm1143, %v1129
        %1163 = vst.msk [vmem:[%s199 + $0x98] sm:$0xff] %vm1143, %v1130
        %1164 = vst.msk [vmem:[%s199 + $0xa0] sm:$0xff] %vm1143, %v1131
        %1165 = vst.msk [vmem:[%s199 + $0xa8] sm:$0xff] %vm1143, %v1132
        %1166 = vst.msk [vmem:[%s199 + $0xb0] sm:$0xff] %vm1143, %v1133
        %1167 = vst.msk [vmem:[%s199 + $0xb8] sm:$0xff] %vm1143, %v1134
        %1168 = vst.msk [vmem:[%s199 + $0xc0] sm:$0xff] %vm1143, %v1135
        %1169 = vst.msk [vmem:[%s199 + $0xc8] sm:$0xff] %vm1143, %v1136
        %1170 = vst.msk [vmem:[%s199 + $0xd0] sm:$0xff] %vm1143, %v1137
        %1171 = vst.msk [vmem:[%s199 + $0xd8] sm:$0xff] %vm1143, %v1138
        %1172 = vst.msk [vmem:[%s199 + $0xe0] sm:$0xff] %vm1143, %v1139
        %1173 = vst.msk [vmem:[%s199 + $0xe8] sm:$0xff] %vm1143, %v1140
        %1174 = vst.msk [vmem:[%s199 + $0xf0] sm:$0xff] %vm1143, %v1141
        %1175 = vst.msk [vmem:[%s199 + $0xf8] sm:$0xff] %vm1143, %v1142
        %s1176 = sand.u32 %s112, 1
        %s1177 = sand.u32 %s112, 1
        %s1178 = smul.addr %s1177, 256
        %s1179 = scalar_lea.vmem [#allocation2], %s1178
        // Predicated region
        $region37: #{tpu_custom_call.1} parent=35 // pred_check
          %p1180 = pneg %p122
        $region38: #{tpu_custom_call.1} parent=35 // pred_check_branch
          %1182 = sbr.rel (%p1180) target = $region40
        $region39: #{tpu_custom_call.1} parent=35 // pred_region
          %s1183 = smul.u32 32, %s15
          %s1184 = ssub.s32 63, %s1183
          %p1185 = scmp.lt.s32.totalorder %s1184, 32
          %s1186 = scalar_select %p1185, %s1184, 32
          %s1187 = smul.u32 128, %s1186
          %p1188 = scmp.ne.s32.totalorder 0, %s1187
          %s1189 = smul.addr %s1183, 8
          %s1190 = scalar_lea.vmem %s4, %s1189
          // Predicated region
          $region41: #{tpu_custom_call.1} parent=39 // pred_check
            %p1191 = pneg %p1188
          $region42: #{tpu_custom_call.1} parent=39 // pred_check_branch
            %1193 = sbr.rel (%p1191) target = $region44
          $region43: #{tpu_custom_call.1} parent=39 // pred_region
            // Predicated region
            $region45: #{tpu_custom_call.1} parent=43 // pred_check
              _
            $region46: #{tpu_custom_call.1} parent=43 // pred_check_branch
              %1195 = sbr.rel (0) target = $region48
            $region47: #{tpu_custom_call.1} parent=43 // pred_region
              // Predicated region
              $region67: #{tpu_custom_call.1} parent=47 // pred_check
                _
              $region68: #{tpu_custom_call.1} parent=47 // pred_check_branch
                %1306 = sbr.rel (0) target = $region70
              $region69: #{tpu_custom_call.1} parent=47 // pred_region
                %s1307 = sshrl.u32 %s1186, 5
                // While loop
                $region71: #{tpu_custom_call.1} parent=69 // loop_pre_header
                  _
                $region72: #{tpu_custom_call.1} parent=69 // loop_header
                  %s1309 = sphi 0, %s1311
                  %p1310 = scmp.ge.s32.totalorder %s1309, %s1307
                  %s1314 = sphi 0, %s1383
                  %s1315 = sphi %s1179, %s1386
                  %s1316 = sphi %s1190, %s1387
                $region73: #{tpu_custom_call.1} parent=69 // loop_header_branch
                  %1313 = sbr.rel (%p1310) target = $region77
                $region74: #{tpu_custom_call.1} parent=69 // loop_body
                  %v1317 = vld [vmem:[%s1315] sm:$0xff]
                  %1318 = vst [vmem:[%s1316] sm:$0xff] %v1317
                  %v1319 = vld [vmem:[%s1315 + $0x8] sm:$0xff]
                  %1320 = vst [vmem:[%s1316 + $0x8] sm:$0xff] %v1319
                  %v1321 = vld [vmem:[%s1315 + $0x10] sm:$0xff]
                  %1322 = vst [vmem:[%s1316 + $0x10] sm:$0xff] %v1321
                  %v1323 = vld [vmem:[%s1315 + $0x18] sm:$0xff]
                  %1324 = vst [vmem:[%s1316 + $0x18] sm:$0xff] %v1323
                  %v1325 = vld [vmem:[%s1315 + $0x20] sm:$0xff]
                  %1326 = vst [vmem:[%s1316 + $0x20] sm:$0xff] %v1325
                  %v1327 = vld [vmem:[%s1315 + $0x28] sm:$0xff]
                  %1328 = vst [vmem:[%s1316 + $0x28] sm:$0xff] %v1327
                  %v1329 = vld [vmem:[%s1315 + $0x30] sm:$0xff]
                  %1330 = vst [vmem:[%s1316 + $0x30] sm:$0xff] %v1329
                  %v1331 = vld [vmem:[%s1315 + $0x38] sm:$0xff]
                  %1332 = vst [vmem:[%s1316 + $0x38] sm:$0xff] %v1331
                  %v1333 = vld [vmem:[%s1315 + $0x40] sm:$0xff]
                  %1334 = vst [vmem:[%s1316 + $0x40] sm:$0xff] %v1333
                  %v1335 = vld [vmem:[%s1315 + $0x48] sm:$0xff]
                  %1336 = vst [vmem:[%s1316 + $0x48] sm:$0xff] %v1335
                  %v1337 = vld [vmem:[%s1315 + $0x50] sm:$0xff]
                  %1338 = vst [vmem:[%s1316 + $0x50] sm:$0xff] %v1337
                  %v1339 = vld [vmem:[%s1315 + $0x58] sm:$0xff]
                  %1340 = vst [vmem:[%s1316 + $0x58] sm:$0xff] %v1339
                  %v1341 = vld [vmem:[%s1315 + $0x60] sm:$0xff]
                  %1342 = vst [vmem:[%s1316 + $0x60] sm:$0xff] %v1341
                  %v1343 = vld [vmem:[%s1315 + $0x68] sm:$0xff]
                  %1344 = vst [vmem:[%s1316 + $0x68] sm:$0xff] %v1343
                  %v1345 = vld [vmem:[%s1315 + $0x70] sm:$0xff]
                  %1346 = vst [vmem:[%s1316 + $0x70] sm:$0xff] %v1345
                  %v1347 = vld [vmem:[%s1315 + $0x78] sm:$0xff]
                  %1348 = vst [vmem:[%s1316 + $0x78] sm:$0xff] %v1347
                  %v1349 = vld [vmem:[%s1315 + $0x80] sm:$0xff]
                  %1350 = vst [vmem:[%s1316 + $0x80] sm:$0xff] %v1349
                  %v1351 = vld [vmem:[%s1315 + $0x88] sm:$0xff]
                  %1352 = vst [vmem:[%s1316 + $0x88] sm:$0xff] %v1351
                  %v1353 = vld [vmem:[%s1315 + $0x90] sm:$0xff]
                  %1354 = vst [vmem:[%s1316 + $0x90] sm:$0xff] %v1353
                  %v1355 = vld [vmem:[%s1315 + $0x98] sm:$0xff]
                  %1356 = vst [vmem:[%s1316 + $0x98] sm:$0xff] %v1355
                  %v1357 = vld [vmem:[%s1315 + $0xa0] sm:$0xff]
                  %1358 = vst [vmem:[%s1316 + $0xa0] sm:$0xff] %v1357
                  %v1359 = vld [vmem:[%s1315 + $0xa8] sm:$0xff]
                  %1360 = vst [vmem:[%s1316 + $0xa8] sm:$0xff] %v1359
                  %v1361 = vld [vmem:[%s1315 + $0xb0] sm:$0xff]
                  %1362 = vst [vmem:[%s1316 + $0xb0] sm:$0xff] %v1361
                  %v1363 = vld [vmem:[%s1315 + $0xb8] sm:$0xff]
                  %1364 = vst [vmem:[%s1316 + $0xb8] sm:$0xff] %v1363
                  %v1365 = vld [vmem:[%s1315 + $0xc0] sm:$0xff]
                  %1366 = vst [vmem:[%s1316 + $0xc0] sm:$0xff] %v1365
                  %v1367 = vld [vmem:[%s1315 + $0xc8] sm:$0xff]
                  %1368 = vst [vmem:[%s1316 + $0xc8] sm:$0xff] %v1367
                  %v1369 = vld [vmem:[%s1315 + $0xd0] sm:$0xff]
                  %1370 = vst [vmem:[%s1316 + $0xd0] sm:$0xff] %v1369
                  %v1371 = vld [vmem:[%s1315 + $0xd8] sm:$0xff]
                  %1372 = vst [vmem:[%s1316 + $0xd8] sm:$0xff] %v1371
                  %v1373 = vld [vmem:[%s1315 + $0xe0] sm:$0xff]
                  %1374 = vst [vmem:[%s1316 + $0xe0] sm:$0xff] %v1373
                  %v1375 = vld [vmem:[%s1315 + $0xe8] sm:$0xff]
                  %1376 = vst [vmem:[%s1316 + $0xe8] sm:$0xff] %v1375
                  %v1377 = vld [vmem:[%s1315 + $0xf0] sm:$0xff]
                  %1378 = vst [vmem:[%s1316 + $0xf0] sm:$0xff] %v1377
                  %v1379 = vld [vmem:[%s1315 + $0xf8] sm:$0xff]
                  %1380 = vst [vmem:[%s1316 + $0xf8] sm:$0xff] %v1379
                  %s1381 = sadd.s32 1, %s1314
                  %p1382 = scmp.ge.s32.totalorder %s1381, %s1307
                  %s1383 = scalar_select %p1382, 0, %s1381
                  %s1384 = smul.u32 %s1383, 256
                  %s1385 = smul.u32 %s1383, 256
                  %s1386 = scalar_lea.vmem %s1179, %s1384 [#allocation2]
                  %s1387 = scalar_lea.vmem %s1190, %s1385
                $region75: #{tpu_custom_call.1} parent=69 // loop_footer
                  %s1311 = sadd.s32 %s1309, 1
                $region76: #{tpu_custom_call.1} parent=69 // loop_footer_branch
                  %1308 = sbr.rel target = $region72
                $region77: #{tpu_custom_call.1} parent=69 // loop_exit
                  _
                %s1388 = sshrl.u32 %s1186, 5
                %s1389 = sand.u32 %s1186, 31
                %s1390 = smul.u32 %s1388, 32
                %s1391 = smul.u32 8, %s1390
                %s1392 = scalar_lea.vmem %s1179, %s1391 [#allocation2]
                %s1393 = smul.u32 8, %s1390
                %s1394 = scalar_lea.vmem %s1190, %s1393
                // While loop
                $region78: #{tpu_custom_call.1} parent=69 // loop_pre_header
                  _
                $region79: #{tpu_custom_call.1} parent=69 // loop_header
                  %s1396 = sphi 0, %s1398
                  %p1397 = scmp.ge.s32.totalorder %s1396, %s1389
                  %s1401 = sphi 0, %s1408
                  %s1402 = sphi %s1392, %s1411
                  %s1403 = sphi %s1394, %s1412
                $region80: #{tpu_custom_call.1} parent=69 // loop_header_branch
                  %1400 = sbr.rel (%p1397) target = $region84
                $region81: #{tpu_custom_call.1} parent=69 // loop_body
                  %v1404 = vld [vmem:[%s1402] sm:$0xff]
                  %1405 = vst [vmem:[%s1403] sm:$0xff] %v1404
                  %s1406 = sadd.s32 1, %s1401
                  %p1407 = scmp.ge.s32.totalorder %s1406, %s1389
                  %s1408 = scalar_select %p1407, 0, %s1406
                  %s1409 = smul.u32 %s1408, 8
                  %s1410 = smul.u32 %s1408, 8
                  %s1411 = scalar_lea.vmem %s1392, %s1409 [#allocation2]
                  %s1412 = scalar_lea.vmem %s1394, %s1410
                $region82: #{tpu_custom_call.1} parent=69 // loop_footer
                  %s1398 = sadd.s32 %s1396, 1
                $region83: #{tpu_custom_call.1} parent=69 // loop_footer_branch
                  %1395 = sbr.rel target = $region79
                $region84: #{tpu_custom_call.1} parent=69 // loop_exit
                  _
              $region70: #{tpu_custom_call.1} parent=47 // pred_fallthru
                _
              // Predicated region
              $region85: #{tpu_custom_call.1} parent=47 // pred_check
                _
              $region86: #{tpu_custom_call.1} parent=47 // pred_check_branch
                %1414 = sbr.rel target = $region88
              $region87: #{tpu_custom_call.1} parent=47 // pred_region
                _
              $region88: #{tpu_custom_call.1} parent=47 // pred_fallthru
                _
            $region48: #{tpu_custom_call.1} parent=43 // pred_fallthru
              _
            // Predicated region
            $region49: #{tpu_custom_call.1} parent=43 // pred_check
              _
            $region50: #{tpu_custom_call.1} parent=43 // pred_check_branch
              %1197 = sbr.rel target = $region52
            $region51: #{tpu_custom_call.1} parent=43 // pred_region
              %s1199 = sshrl.u32 %s1186, 5
              // While loop
              $region53: #{tpu_custom_call.1} parent=51 // loop_pre_header
                _
              $region54: #{tpu_custom_call.1} parent=51 // loop_header
                %s1201 = sphi 0, %s1203
                %p1202 = scmp.ge.s32.totalorder %s1201, %s1199
                %s1206 = sphi 0, %s1275
                %s1207 = sphi %s1179, %s1278
                %s1208 = sphi %s1190, %s1279
              $region55: #{tpu_custom_call.1} parent=51 // loop_header_branch
                %1205 = sbr.rel (%p1202) target = $region59
              $region56: #{tpu_custom_call.1} parent=51 // loop_body
                %v1209 = vld [vmem:[%s1207] sm:$0xff]
                %1210 = vst [vmem:[%s1208] sm:$0xff] %v1209
                %v1211 = vld [vmem:[%s1207 + $0x8] sm:$0xff]
                %1212 = vst [vmem:[%s1208 + $0x8] sm:$0xff] %v1211
                %v1213 = vld [vmem:[%s1207 + $0x10] sm:$0xff]
                %1214 = vst [vmem:[%s1208 + $0x10] sm:$0xff] %v1213
                %v1215 = vld [vmem:[%s1207 + $0x18] sm:$0xff]
                %1216 = vst [vmem:[%s1208 + $0x18] sm:$0xff] %v1215
                %v1217 = vld [vmem:[%s1207 + $0x20] sm:$0xff]
                %1218 = vst [vmem:[%s1208 + $0x20] sm:$0xff] %v1217
                %v1219 = vld [vmem:[%s1207 + $0x28] sm:$0xff]
                %1220 = vst [vmem:[%s1208 + $0x28] sm:$0xff] %v1219
                %v1221 = vld [vmem:[%s1207 + $0x30] sm:$0xff]
                %1222 = vst [vmem:[%s1208 + $0x30] sm:$0xff] %v1221
                %v1223 = vld [vmem:[%s1207 + $0x38] sm:$0xff]
                %1224 = vst [vmem:[%s1208 + $0x38] sm:$0xff] %v1223
                %v1225 = vld [vmem:[%s1207 + $0x40] sm:$0xff]
                %1226 = vst [vmem:[%s1208 + $0x40] sm:$0xff] %v1225
                %v1227 = vld [vmem:[%s1207 + $0x48] sm:$0xff]
                %1228 = vst [vmem:[%s1208 + $0x48] sm:$0xff] %v1227
                %v1229 = vld [vmem:[%s1207 + $0x50] sm:$0xff]
                %1230 = vst [vmem:[%s1208 + $0x50] sm:$0xff] %v1229
                %v1231 = vld [vmem:[%s1207 + $0x58] sm:$0xff]
                %1232 = vst [vmem:[%s1208 + $0x58] sm:$0xff] %v1231
                %v1233 = vld [vmem:[%s1207 + $0x60] sm:$0xff]
                %1234 = vst [vmem:[%s1208 + $0x60] sm:$0xff] %v1233
                %v1235 = vld [vmem:[%s1207 + $0x68] sm:$0xff]
                %1236 = vst [vmem:[%s1208 + $0x68] sm:$0xff] %v1235
                %v1237 = vld [vmem:[%s1207 + $0x70] sm:$0xff]
                %1238 = vst [vmem:[%s1208 + $0x70] sm:$0xff] %v1237
                %v1239 = vld [vmem:[%s1207 + $0x78] sm:$0xff]
                %1240 = vst [vmem:[%s1208 + $0x78] sm:$0xff] %v1239
                %v1241 = vld [vmem:[%s1207 + $0x80] sm:$0xff]
                %1242 = vst [vmem:[%s1208 + $0x80] sm:$0xff] %v1241
                %v1243 = vld [vmem:[%s1207 + $0x88] sm:$0xff]
                %1244 = vst [vmem:[%s1208 + $0x88] sm:$0xff] %v1243
                %v1245 = vld [vmem:[%s1207 + $0x90] sm:$0xff]
                %1246 = vst [vmem:[%s1208 + $0x90] sm:$0xff] %v1245
                %v1247 = vld [vmem:[%s1207 + $0x98] sm:$0xff]
                %1248 = vst [vmem:[%s1208 + $0x98] sm:$0xff] %v1247
                %v1249 = vld [vmem:[%s1207 + $0xa0] sm:$0xff]
                %1250 = vst [vmem:[%s1208 + $0xa0] sm:$0xff] %v1249
                %v1251 = vld [vmem:[%s1207 + $0xa8] sm:$0xff]
                %1252 = vst [vmem:[%s1208 + $0xa8] sm:$0xff] %v1251
                %v1253 = vld [vmem:[%s1207 + $0xb0] sm:$0xff]
                %1254 = vst [vmem:[%s1208 + $0xb0] sm:$0xff] %v1253
                %v1255 = vld [vmem:[%s1207 + $0xb8] sm:$0xff]
                %1256 = vst [vmem:[%s1208 + $0xb8] sm:$0xff] %v1255
                %v1257 = vld [vmem:[%s1207 + $0xc0] sm:$0xff]
                %1258 = vst [vmem:[%s1208 + $0xc0] sm:$0xff] %v1257
                %v1259 = vld [vmem:[%s1207 + $0xc8] sm:$0xff]
                %1260 = vst [vmem:[%s1208 + $0xc8] sm:$0xff] %v1259
                %v1261 = vld [vmem:[%s1207 + $0xd0] sm:$0xff]
                %1262 = vst [vmem:[%s1208 + $0xd0] sm:$0xff] %v1261
                %v1263 = vld [vmem:[%s1207 + $0xd8] sm:$0xff]
                %1264 = vst [vmem:[%s1208 + $0xd8] sm:$0xff] %v1263
                %v1265 = vld [vmem:[%s1207 + $0xe0] sm:$0xff]
                %1266 = vst [vmem:[%s1208 + $0xe0] sm:$0xff] %v1265
                %v1267 = vld [vmem:[%s1207 + $0xe8] sm:$0xff]
                %1268 = vst [vmem:[%s1208 + $0xe8] sm:$0xff] %v1267
                %v1269 = vld [vmem:[%s1207 + $0xf0] sm:$0xff]
                %1270 = vst [vmem:[%s1208 + $0xf0] sm:$0xff] %v1269
                %v1271 = vld [vmem:[%s1207 + $0xf8] sm:$0xff]
                %1272 = vst [vmem:[%s1208 + $0xf8] sm:$0xff] %v1271
                %s1273 = sadd.s32 1, %s1206
                %p1274 = scmp.ge.s32.totalorder %s1273, %s1199
                %s1275 = scalar_select %p1274, 0, %s1273
                %s1276 = smul.u32 %s1275, 256
                %s1277 = smul.u32 %s1275, 256
                %s1278 = scalar_lea.vmem %s1179, %s1276 [#allocation2]
                %s1279 = scalar_lea.vmem %s1190, %s1277
              $region57: #{tpu_custom_call.1} parent=51 // loop_footer
                %s1203 = sadd.s32 %s1201, 1
              $region58: #{tpu_custom_call.1} parent=51 // loop_footer_branch
                %1200 = sbr.rel target = $region54
              $region59: #{tpu_custom_call.1} parent=51 // loop_exit
                _
              %s1280 = sshrl.u32 %s1186, 5
              %s1281 = sand.u32 %s1186, 31
              %s1282 = smul.u32 %s1280, 32
              %s1283 = smul.u32 8, %s1282
              %s1284 = scalar_lea.vmem %s1179, %s1283 [#allocation2]
              %s1285 = smul.u32 8, %s1282
              %s1286 = scalar_lea.vmem %s1190, %s1285
              // While loop
              $region60: #{tpu_custom_call.1} parent=51 // loop_pre_header
                _
              $region61: #{tpu_custom_call.1} parent=51 // loop_header
                %s1288 = sphi 0, %s1290
                %p1289 = scmp.ge.s32.totalorder %s1288, %s1281
                %s1293 = sphi 0, %s1300
                %s1294 = sphi %s1284, %s1303
                %s1295 = sphi %s1286, %s1304
              $region62: #{tpu_custom_call.1} parent=51 // loop_header_branch
                %1292 = sbr.rel (%p1289) target = $region66
              $region63: #{tpu_custom_call.1} parent=51 // loop_body
                %v1296 = vld [vmem:[%s1294] sm:$0xff]
                %1297 = vst [vmem:[%s1295] sm:$0xff] %v1296
                %s1298 = sadd.s32 1, %s1293
                %p1299 = scmp.ge.s32.totalorder %s1298, %s1281
                %s1300 = scalar_select %p1299, 0, %s1298
                %s1301 = smul.u32 %s1300, 8
                %s1302 = smul.u32 %s1300, 8
                %s1303 = scalar_lea.vmem %s1284, %s1301 [#allocation2]
                %s1304 = scalar_lea.vmem %s1286, %s1302
              $region64: #{tpu_custom_call.1} parent=51 // loop_footer
                %s1290 = sadd.s32 %s1288, 1
              $region65: #{tpu_custom_call.1} parent=51 // loop_footer_branch
                %1287 = sbr.rel target = $region61
              $region66: #{tpu_custom_call.1} parent=51 // loop_exit
                _
            $region52: #{tpu_custom_call.1} parent=43 // pred_fallthru
              _
          $region44: #{tpu_custom_call.1} parent=39 // pred_fallthru
            _
          %1415 = vnop
        $region40: #{tpu_custom_call.1} parent=35 // pred_fallthru
          _
      $region36: #{tpu_custom_call.1} parent=5 // pred_fallthru
        _
      %p1416 = scmp.le.s32.totalorder 2, %s10
      // Predicated region
      $region89: #{tpu_custom_call.1} parent=5 // pred_check
        %p1417 = pneg %p1416
      $region90: #{tpu_custom_call.1} parent=5 // pred_check_branch
        %1419 = sbr.rel (%p1417) target = $region92
      $region91: #{tpu_custom_call.1} parent=5 // pred_region
        %s1420 = ssub.s32 %s10, 2
        // Predicated region
        $region93: #{tpu_custom_call.1} parent=91 // pred_check
          %p1421 = pneg %p128
        $region94: #{tpu_custom_call.1} parent=91 // pred_check_branch
          %1423 = sbr.rel (%p1421) target = $region96
        $region95: #{tpu_custom_call.1} parent=91 // pred_region
          %s1424 = sand.u32 %s113, 1
          %s1425 = sand.u32 %s113, 1
          %s1426 = smul.addr %s1425, 256
          %s1427 = scalar_lea.vmem [#allocation2], %s1426
        $region96: #{tpu_custom_call.1} parent=91 // pred_fallthru
          _
      $region92: #{tpu_custom_call.1} parent=5 // pred_fallthru
        _
    $region6: #{tpu_custom_call.1} parent=1 // loop_footer
      %s14 = sadd.s32 1, %s10
    $region7: #{tpu_custom_call.1} parent=1 // loop_footer_branch
      %9 = sbr.rel target = $region3
    $region8: #{tpu_custom_call.1} parent=1 // loop_exit
      _

</llo_original>
